<compile_context>
chip_gen: v6e
topology: v6e:2x2x1
jax: 0.10.0
libtpu: 0.0.40
codegen_flags: <defaults>
</compile_context>

<pallas_src>
import functools

import jax
import jax.numpy as jnp
from jax.experimental import pallas as pl
from jax.experimental.pallas import tpu as pltpu

VIT_FEATURES = 512   # model1 (ViT backbone) feature width
TAB_FEATURES = 64    # model2 (tabular net) feature width
HEAD_IN = VIT_FEATURES + TAB_FEATURES  # 576 -> nn.Linear(576, 1)


def _head_kernel(x1_ref, x2_ref, w1_ref, w2_ref, b_ref, o_ref):
    # x1: [TB, 512], x2: [TB, 64], w1: [512, 1], w2: [64, 1], b: [1, 1]
    # concat(x1, x2) @ W  ==  x1 @ W[:512] + x2 @ W[512:]   (no in-kernel concat)
    y = jnp.dot(x1_ref[...], w1_ref[...], preferred_element_type=jnp.float32)
    y = y + jnp.dot(x2_ref[...], w2_ref[...], preferred_element_type=jnp.float32)
    y = y + b_ref[...]
    # sigmoid on VPU/EUP (exp overflow for very negative y saturates cleanly to 0)
    o_ref[...] = (1.0 / (1.0 + jnp.exp(-y))).astype(o_ref.dtype)


def _round_up(n, m):
    return (n + m - 1) // m * m


@functools.partial(jax.jit, static_argnames=("tile_b",))
def vit_tabular_forward(x1_feats, x2_feats, w, b, *, tile_b=4096):
    """sigmoid(concat(x1_feats, x2_feats, axis=1) @ w + b)

    x1_feats: [B, 512] f32   (output of model1, the ViT backbone)
    x2_feats: [B, 64]  f32   (output of model2, the tabular subnet)
    w:        [576, 1] f32   (nn.Linear(576, 1).weight pre-transposed)
    b:        [1, 1]   f32
    returns:  [B, 1]   f32
    """
    B, f1 = x1_feats.shape
    f2 = x2_feats.shape[1]
    assert f1 + f2 == w.shape[0]

    # Batch tile: multiple of 8 sublanes; clamp so small batches stay one step.
    tile_b = min(tile_b, _round_up(B, 8))
    b_pad = _round_up(B, tile_b)
    if b_pad != B:
        pad = b_pad - B
        x1_feats = jnp.pad(x1_feats, ((0, pad), (0, 0)))
        x2_feats = jnp.pad(x2_feats, ((0, pad), (0, 0)))

    w1 = w[:f1]   # [512, 1] -> ViT-feature slice of the head weight
    w2 = w[f1:]   # [64, 1]  -> tabular-feature slice of the head weight

    grid = (b_pad // tile_b,)
    flops = 2 * b_pad * (f1 + f2)
    bytes_accessed = b_pad * (f1 + f2 + 1) * 4 + (f1 + f2 + 1) * 4

    out = pl.pallas_call(
        _head_kernel,
        out_shape=jax.ShapeDtypeStruct((b_pad, 1), jnp.float32),
        grid=grid,
        in_specs=[
            pl.BlockSpec((tile_b, f1), lambda i: (i, 0)),   # x1: streamed per batch tile
            pl.BlockSpec((tile_b, f2), lambda i: (i, 0)),   # x2: streamed per batch tile
            pl.BlockSpec((f1, 1), lambda i: (0, 0)),        # w1: resident in VMEM
            pl.BlockSpec((f2, 1), lambda i: (0, 0)),        # w2: resident in VMEM
            pl.BlockSpec((1, 1), lambda i: (0, 0)),         # b : resident in VMEM
        ],
        out_specs=pl.BlockSpec((tile_b, 1), lambda i: (i, 0)),
        compiler_params=pltpu.CompilerParams(
            dimension_semantics=("parallel",),  # v7x: shard batch tiles over both TCs
        ),
        cost_estimate=pl.CostEstimate(
            flops=flops, transcendentals=b_pad, bytes_accessed=bytes_accessed),
    )(x1_feats, x2_feats, w1, w2, b)
    return out[:B]


if __name__ == "__main__":
    key = jax.random.PRNGKey(0)
    k1, k2, kw, kb = jax.random.split(key, 4)

    # TODO(synk): model1 (ViT) and model2 (tabular net) are constructor-injected
    # submodules with no architecture given in the spec; we feed their feature
    # outputs ([B,512] and [B,64]) directly into the fused head kernel.
    B = 8
    x1_feats = jax.random.normal(k1, (B, VIT_FEATURES), jnp.float32)
    x2_feats = jax.random.normal(k2, (B, TAB_FEATURES), jnp.float32)

    bound = 1.0 / (HEAD_IN ** 0.5)  # PyTorch nn.Linear default init range
    w = jax.random.uniform(kw, (HEAD_IN, 1), jnp.float32, -bound, bound)
    b = jax.random.uniform(kb, (1, 1), jnp.float32, -bound, bound)

    out = jax.block_until_ready(vit_tabular_forward(x1_feats, x2_feats, w, b))
    ref = jax.nn.sigmoid(
        jnp.dot(jnp.concatenate([x1_feats, x2_feats], axis=1), w,
                precision=jax.lax.Precision.HIGHEST) + b)
    assert out.shape == (B, 1)
    assert jnp.allclose(out, ref, atol=1e-4, rtol=1e-4)

    # Second check: ragged batch + multi-step grid (exercises padding + tiling).
    B2 = 300
    x1b = jax.random.normal(k1, (B2, VIT_FEATURES), jnp.float32)
    x2b = jax.random.normal(k2, (B2, TAB_FEATURES), jnp.float32)
    out2 = jax.block_until_ready(
        vit_tabular_forward(x1b, x2b, w, b, tile_b=128))
    ref2 = jax.nn.sigmoid(
        jnp.dot(jnp.concatenate([x1b, x2b], axis=1), w,
                precision=jax.lax.Precision.HIGHEST) + b)
    assert out2.shape == (B2, 1)
    assert jnp.allclose(out2, ref2, atol=1e-4, rtol=1e-4)

    print("KERNEL_OK")
</pallas_src>

<mosaic_0001>
module attributes {stable_mosaic.version = 11 : i64} {
  func.func @_head_kernel(%arg0: i32, %arg1: memref<8x512xf32, #tpu.memory_space<vmem>>, %arg2: memref<8x64xf32, #tpu.memory_space<vmem>>, %arg3: memref<512x1xf32, #tpu.memory_space<vmem>>, %arg4: memref<64x1xf32, #tpu.memory_space<vmem>>, %arg5: memref<1x1xf32, #tpu.memory_space<vmem>>, %arg6: memref<8x1xf32, #tpu.memory_space<vmem>>) attributes {dimension_semantics = [#tpu.dimension_semantics<parallel>], iteration_bounds = array<i64: 1>, scalar_prefetch = 0 : i64, scratch_operands = 0 : i64, tpu.core_type = #tpu.core_type<tc>, window_params = [{transform_indices = @transform_0, window_bounds = array<i64: 8, 512>}, {transform_indices = @transform_1, window_bounds = array<i64: 8, 64>}, {pipeline_mode = #tpu.pipeline_mode<synchronous>, transform_indices = @transform_2, window_bounds = array<i64: 512, 1>}, {pipeline_mode = #tpu.pipeline_mode<synchronous>, transform_indices = @transform_3, window_bounds = array<i64: 64, 1>}, {pipeline_mode = #tpu.pipeline_mode<synchronous>, transform_indices = @transform_4, window_bounds = array<i64: 1, 1>}, {transform_indices = @transform_5, window_bounds = array<i64: 8, 1>}]} {
    %c0 = arith.constant 0 : index
    %c0_0 = arith.constant 0 : index
    %0 = vector.load %arg1[%c0, %c0_0] : memref<8x512xf32, #tpu.memory_space<vmem>>, vector<8x512xf32>
    %c0_1 = arith.constant 0 : index
    %c0_2 = arith.constant 0 : index
    %1 = vector.load %arg3[%c0_1, %c0_2] : memref<512x1xf32, #tpu.memory_space<vmem>>, vector<512x1xf32>
    %cst = arith.constant dense<0.000000e+00> : vector<8x1xf32>
    %2 = tpu.matmul %0, %1, %cst {dimension_numbers = #tpu.dot_dimension_numbers<[1], [0], [0], [1], [0, 0, 1, 1], [], []>} : vector<8x512xf32>, vector<512x1xf32>, vector<8x1xf32> -> vector<8x1xf32>
    %c0_3 = arith.constant 0 : index
    %c0_4 = arith.constant 0 : index
    %3 = vector.load %arg2[%c0_3, %c0_4] : memref<8x64xf32, #tpu.memory_space<vmem>>, vector<8x64xf32>
    %c0_5 = arith.constant 0 : index
    %c0_6 = arith.constant 0 : index
    %4 = vector.load %arg4[%c0_5, %c0_6] : memref<64x1xf32, #tpu.memory_space<vmem>>, vector<64x1xf32>
    %cst_7 = arith.constant dense<0.000000e+00> : vector<8x1xf32>
    %5 = tpu.matmul %3, %4, %cst_7 {dimension_numbers = #tpu.dot_dimension_numbers<[1], [0], [0], [1], [0, 0, 1, 1], [], []>} : vector<8x64xf32>, vector<64x1xf32>, vector<8x1xf32> -> vector<8x1xf32>
    %6 = arith.addf %2, %5 : vector<8x1xf32>
    %c0_8 = arith.constant 0 : index
    %c0_9 = arith.constant 0 : index
    %7 = vector.load %arg5[%c0_8, %c0_9] : memref<1x1xf32, #tpu.memory_space<vmem>>, vector<1x1xf32>
    %8 = vector.broadcast %7 : vector<1x1xf32> to vector<8x1xf32>
    %9 = arith.addf %6, %8 : vector<8x1xf32>
    %cst_10 = arith.constant 0.000000e+00 : f32
    %10 = vector.broadcast %cst_10 : f32 to vector<8x1xf32>
    %11 = arith.subf %10, %9 : vector<8x1xf32>
    %12 = math.exp %11 : vector<8x1xf32>
    %cst_11 = arith.constant 1.000000e+00 : f32
    %13 = vector.broadcast %cst_11 : f32 to vector<8x1xf32>
    %14 = arith.addf %13, %12 : vector<8x1xf32>
    %cst_12 = arith.constant 1.000000e+00 : f32
    %15 = vector.broadcast %cst_12 : f32 to vector<8x1xf32>
    %16 = arith.divf %15, %14 : vector<8x1xf32>
    %c0_13 = arith.constant 0 : index
    %c0_14 = arith.constant 0 : index
    %17 = vector.load %arg6[%c0_13, %c0_14] : memref<8x1xf32, #tpu.memory_space<vmem>>, vector<8x1xf32>
    tpu.vector_store %arg6[%c0_13, %c0_14], %16 {strides = array<i32>} : memref<8x1xf32, #tpu.memory_space<vmem>>, vector<8x1xf32>,
    return
  }
  func.func @transform_0(%arg0: i32) -> (i32, i32) {
    %c0_i32 = arith.constant 0 : i32
    %c0_i32_0 = arith.constant 0 : i32
    return %arg0, %c0_i32 : i32, i32
  }
  func.func @transform_1(%arg0: i32) -> (i32, i32) {
    %c0_i32 = arith.constant 0 : i32
    %c0_i32_0 = arith.constant 0 : i32
    return %arg0, %c0_i32 : i32, i32
  }
  func.func @transform_2(%arg0: i32) -> (i32, i32) {
    %c0_i32 = arith.constant 0 : i32
    %c0_i32_0 = arith.constant 0 : i32
    %c0_i32_1 = arith.constant 0 : i32
    return %c0_i32, %c0_i32_0 : i32, i32
  }
  func.func @transform_3(%arg0: i32) -> (i32, i32) {
    %c0_i32 = arith.constant 0 : i32
    %c0_i32_0 = arith.constant 0 : i32
    %c0_i32_1 = arith.constant 0 : i32
    return %c0_i32, %c0_i32_0 : i32, i32
  }
  func.func @transform_4(%arg0: i32) -> (i32, i32) {
    %c0_i32 = arith.constant 0 : i32
    %c0_i32_0 = arith.constant 0 : i32
    %c0_i32_1 = arith.constant 0 : i32
    return %c0_i32, %c0_i32_0 : i32, i32
  }
  func.func @transform_5(%arg0: i32) -> (i32, i32) {
    %c0_i32 = arith.constant 0 : i32
    %c0_i32_0 = arith.constant 0 : i32
    return %arg0, %c0_i32 : i32, i32
  }
}

</mosaic_0001>

<llo_original>
// kernel: vit_tabular_forward.1
$region0: #{vit_tabular_forward.1}
  #allocation0 [shape = 'u32[]', space=smem, size = 0x4, offset = 0x4, fixed_abs, tag = 'smem constant byte address 0x4 - core index']
  #allocation1 [shape = 'u32[144,128]{1,0:T(1,128)}', space=vmem, size = 0x12000, scoped, tag = 'internal scratch']
  #allocation2 [shape = 'f32[1,1]{1,0:T(1,128)S(1)}', space=vmem, size = 0x200, scoped, tag = 'scoped memory for vit_tabular_forward.1']
  %s0 = inlined_call_operand.vmem [shape: f32[8,512], index: 0, kind: input, shape index: {}]
  %s1 = inlined_call_operand.vmem [shape: f32[8,64], index: 1, kind: input, shape index: {}]
  %s2 = inlined_call_operand.vmem [shape: f32[512,1], index: 2, kind: input, shape index: {}]
  %s3 = inlined_call_operand.vmem [shape: f32[64,1], index: 3, kind: input, shape index: {}]
  %s4 = inlined_call_operand.<no memory space> [shape: f32[1,1], index: 4, kind: input, shape index: {}]
  %s5 = inlined_call_operand.vmem [shape: f32[8,1], index: 5, kind: output, shape index: {}]
  %s6 = sld [smem:[#allocation0]]
  $region30: #{vit_tabular_forward.1} parent=0
    _
  %s8 = ssub.s32 1, %s6
  %s9 = scalar_select 0, %s8, %s6
  %v10 = vstv %s4
  %11 = vst [vmem:[#allocation2] sm:$0x1] %v10
  // Predicated region
  $region2: #{vit_tabular_forward.1} parent=0 // pred_check
    _
  $region3: #{vit_tabular_forward.1} parent=0 // pred_check_branch
    %13 = sbr.rel (0) target = $region5
  $region4: #{vit_tabular_forward.1} parent=0 // pred_region
    _
  $region5: #{vit_tabular_forward.1} parent=0 // pred_fallthru
    _
  // Predicated region
  $region6: #{vit_tabular_forward.1} parent=0 // pred_check
    _
  $region7: #{vit_tabular_forward.1} parent=0 // pred_check_branch
    %15 = sbr.rel (0) target = $region9
  $region8: #{vit_tabular_forward.1} parent=0 // pred_region
    _
  $region9: #{vit_tabular_forward.1} parent=0 // pred_fallthru
    _
  // Predicated region
  $region10: #{vit_tabular_forward.1} parent=0 // pred_check
    _
  $region11: #{vit_tabular_forward.1} parent=0 // pred_check_branch
    %17 = sbr.rel (0) target = $region13
  $region12: #{vit_tabular_forward.1} parent=0 // pred_region
    _
  $region13: #{vit_tabular_forward.1} parent=0 // pred_fallthru
    _
  // Predicated region
  $region14: #{vit_tabular_forward.1} parent=0 // pred_check
    _
  $region15: #{vit_tabular_forward.1} parent=0 // pred_check_branch
    %19 = sbr.rel (0) target = $region17
  $region16: #{vit_tabular_forward.1} parent=0 // pred_region
    _
  $region17: #{vit_tabular_forward.1} parent=0 // pred_fallthru
    _
  // Predicated region
  $region18: #{vit_tabular_forward.1} parent=0 // pred_check
    _
  $region19: #{vit_tabular_forward.1} parent=0 // pred_check_branch
    %21 = sbr.rel (0) target = $region21
  $region20: #{vit_tabular_forward.1} parent=0 // pred_region
    _
  $region21: #{vit_tabular_forward.1} parent=0 // pred_fallthru
    _
  %v22 = vld [vmem:[%s0] sm:$0xff]
  %v23 = vld [vmem:[%s0 + $0x8] sm:$0xff]
  %v24 = vld [vmem:[%s0 + $0x10] sm:$0xff]
  %v25 = vld [vmem:[%s0 + $0x18] sm:$0xff]
  %v26 = vld [vmem:[%s2] sm:$0xff]
  %v27 = vld [vmem:[%s2 + $0x8] sm:$0xff]
  %v28 = vld [vmem:[%s2 + $0x10] sm:$0xff]
  %v29 = vld [vmem:[%s2 + $0x18] sm:$0xff]
  %v30 = vld [vmem:[%s2 + $0x20] sm:$0xff]
  %v31 = vld [vmem:[%s2 + $0x28] sm:$0xff]
  %v32 = vld [vmem:[%s2 + $0x30] sm:$0xff]
  %v33 = vld [vmem:[%s2 + $0x38] sm:$0xff]
  %v34 = vld [vmem:[%s2 + $0x40] sm:$0xff]
  %v35 = vld [vmem:[%s2 + $0x48] sm:$0xff]
  %v36 = vld [vmem:[%s2 + $0x50] sm:$0xff]
  %v37 = vld [vmem:[%s2 + $0x58] sm:$0xff]
  %v38 = vld [vmem:[%s2 + $0x60] sm:$0xff]
  %v39 = vld [vmem:[%s2 + $0x68] sm:$0xff]
  %v40 = vld [vmem:[%s2 + $0x70] sm:$0xff]
  %v41 = vld [vmem:[%s2 + $0x78] sm:$0xff]
  %v42 = vld [vmem:[%s2 + $0x80] sm:$0xff]
  %v43 = vld [vmem:[%s2 + $0x88] sm:$0xff]
  %v44 = vld [vmem:[%s2 + $0x90] sm:$0xff]
  %v45 = vld [vmem:[%s2 + $0x98] sm:$0xff]
  %v46 = vld [vmem:[%s2 + $0xa0] sm:$0xff]
  %v47 = vld [vmem:[%s2 + $0xa8] sm:$0xff]
  %v48 = vld [vmem:[%s2 + $0xb0] sm:$0xff]
  %v49 = vld [vmem:[%s2 + $0xb8] sm:$0xff]
  %v50 = vld [vmem:[%s2 + $0xc0] sm:$0xff]
  %v51 = vld [vmem:[%s2 + $0xc8] sm:$0xff]
  %v52 = vld [vmem:[%s2 + $0xd0] sm:$0xff]
  %v53 = vld [vmem:[%s2 + $0xd8] sm:$0xff]
  %v54 = vld [vmem:[%s2 + $0xe0] sm:$0xff]
  %v55 = vld [vmem:[%s2 + $0xe8] sm:$0xff]
  %v56 = vld [vmem:[%s2 + $0xf0] sm:$0xff]
  %v57 = vld [vmem:[%s2 + $0xf8] sm:$0xff]
  %v58 = vld [vmem:[%s2 + $0x100] sm:$0xff]
  %v59 = vld [vmem:[%s2 + $0x108] sm:$0xff]
  %v60 = vld [vmem:[%s2 + $0x110] sm:$0xff]
  %v61 = vld [vmem:[%s2 + $0x118] sm:$0xff]
  %v62 = vld [vmem:[%s2 + $0x120] sm:$0xff]
  %v63 = vld [vmem:[%s2 + $0x128] sm:$0xff]
  %v64 = vld [vmem:[%s2 + $0x130] sm:$0xff]
  %v65 = vld [vmem:[%s2 + $0x138] sm:$0xff]
  %v66 = vld [vmem:[%s2 + $0x140] sm:$0xff]
  %v67 = vld [vmem:[%s2 + $0x148] sm:$0xff]
  %v68 = vld [vmem:[%s2 + $0x150] sm:$0xff]
  %v69 = vld [vmem:[%s2 + $0x158] sm:$0xff]
  %v70 = vld [vmem:[%s2 + $0x160] sm:$0xff]
  %v71 = vld [vmem:[%s2 + $0x168] sm:$0xff]
  %v72 = vld [vmem:[%s2 + $0x170] sm:$0xff]
  %v73 = vld [vmem:[%s2 + $0x178] sm:$0xff]
  %v74 = vld [vmem:[%s2 + $0x180] sm:$0xff]
  %v75 = vld [vmem:[%s2 + $0x188] sm:$0xff]
  %v76 = vld [vmem:[%s2 + $0x190] sm:$0xff]
  %v77 = vld [vmem:[%s2 + $0x198] sm:$0xff]
  %v78 = vld [vmem:[%s2 + $0x1a0] sm:$0xff]
  %v79 = vld [vmem:[%s2 + $0x1a8] sm:$0xff]
  %v80 = vld [vmem:[%s2 + $0x1b0] sm:$0xff]
  %v81 = vld [vmem:[%s2 + $0x1b8] sm:$0xff]
  %v82 = vld [vmem:[%s2 + $0x1c0] sm:$0xff]
  %v83 = vld [vmem:[%s2 + $0x1c8] sm:$0xff]
  %v84 = vld [vmem:[%s2 + $0x1d0] sm:$0xff]
  %v85 = vld [vmem:[%s2 + $0x1d8] sm:$0xff]
  %v86 = vld [vmem:[%s2 + $0x1e0] sm:$0xff]
  %v87 = vld [vmem:[%s2 + $0x1e8] sm:$0xff]
  %v88 = vld [vmem:[%s2 + $0x1f0] sm:$0xff]
  %v89 = vld [vmem:[%s2 + $0x1f8] sm:$0xff]
  %v90 = vld [vmem:[%s1] sm:$0xff]
  %v91 = vld [vmem:[%s3] sm:$0xff]
  %v92 = vld [vmem:[%s3 + $0x8] sm:$0xff]
  %v93 = vld [vmem:[%s3 + $0x10] sm:$0xff]
  %v94 = vld [vmem:[%s3 + $0x18] sm:$0xff]
  %v95 = vld [vmem:[%s3 + $0x20] sm:$0xff]
  %v96 = vld [vmem:[%s3 + $0x28] sm:$0xff]
  %v97 = vld [vmem:[%s3 + $0x30] sm:$0xff]
  %v98 = vld [vmem:[%s3 + $0x38] sm:$0xff]
  %vm99 = vcmask 523264
  %v101 = vsel %vm99, %v90, 0
  %103 = vmatprep.subr.mxu0 0.0
  %104 = vmatpush1.msra.mxu0 0.0
  %105 = vmatprep.subr.mxu0 0.0
  %106 = vmatpush1.msra.mxu0 0.0
  %107 = vmatprep.subr.mxu0 0.0
  %108 = vmatpush1.msra.mxu0 0.0
  %109 = vmatprep.subr.mxu0 0.0
  %110 = vmatpush1.msra.mxu0 0.0
  %111 = vmatprep.subr.mxu0 0.0
  %112 = vmatpush1.msra.mxu0 0.0
  %113 = vmatprep.subr.mxu0 0.0
  %114 = vmatpush1.msra.mxu0 0.0
  %115 = vmatprep.subr.mxu0 0.0
  %116 = vmatpush1.msra.mxu0 0.0
  %117 = vmatprep.subr.mxu0 0.0
  %118 = vmatpush1.msra.mxu0 0.0
  %119 = vmatprep.subr.mxu0 0.0
  %120 = vmatpush1.msra.mxu0 %v98
  %121 = vmatprep.subr.mxu0 0.0
  %122 = vmatpush1.msra.mxu0 %v97
  %123 = vmatprep.subr.mxu0 0.0
  %124 = vmatpush1.msra.mxu0 %v96
  %125 = vmatprep.subr.mxu0 0.0
  %126 = vmatpush1.msra.mxu0 %v95
  %127 = vmatprep.subr.mxu0 0.0
  %128 = vmatpush1.msra.mxu0 %v94
  %129 = vmatprep.subr.mxu0 0.0
  %130 = vmatpush1.msra.mxu0 %v93
  %131 = vmatprep.subr.mxu0 0.0
  %132 = vmatpush1.msra.mxu0 %v92
  %133 = vmatprep.subr.mxu0 0.0
  %134 = vmatpush1.msra.mxu0 %v91
  %135 = vmatprep.subr.mxu0 0.0
  %136 = vmatpush2.msra.mxu0 0.0
  %137 = vmatprep.subr.mxu0 0.0
  %138 = vmatpush2.msra.mxu0 0.0
  %139 = vmatprep.subr.mxu0 0.0
  %140 = vmatpush2.msra.mxu0 0.0
  %141 = vmatprep.subr.mxu0 0.0
  %142 = vmatpush2.msra.mxu0 0.0
  %143 = vmatprep.subr.mxu0 0.0
  %144 = vmatpush2.msra.mxu0 0.0
  %145 = vmatprep.subr.mxu0 0.0
  %146 = vmatpush2.msra.mxu0 0.0
  %147 = vmatprep.subr.mxu0 0.0
  %148 = vmatpush2.msra.mxu0 0.0
  %149 = vmatprep.subr.mxu0 0.0
  %150 = vmatpush2.msra.mxu0 0.0
  %151 = vmatprep.subr.mxu0 0.0
  %152 = vmatpush2.msra.mxu0 0.0
  %153 = vmatprep.subr.mxu0 0.0
  %154 = vmatpush2.msra.mxu0 0.0
  %155 = vmatprep.subr.mxu0 0.0
  %156 = vmatpush2.msra.mxu0 0.0
  %157 = vmatprep.subr.mxu0 0.0
  %158 = vmatpush2.msra.mxu0 0.0
  %159 = vmatprep.subr.mxu0 0.0
  %160 = vmatpush2.msra.mxu0 0.0
  %161 = vmatprep.subr.mxu0 0.0
  %162 = vmatpush2.msra.mxu0 0.0
  %163 = vmatprep.subr.mxu0 0.0
  %164 = vmatpush2.msra.mxu0 0.0
  %165 = vmatprep.subr.mxu0 0.0
  %166 = vmatpush2.msra.mxu0 0.0
  %167 = vmatprep.mubr.f32.mxu0 0.0
  %168 = vmatmul.mubr.f32.gmra.mxu0 %v101
  %v169 = vpop.f32.mrf.mxu0
  %v170 = vadd.f32 0.0, %v169
  %v171 = vpop.f32.mrf.mxu0
  %172 = vdwg.mxu0
  %173 = vmatprep.subr.mxu0 0.0
  %174 = vmatpush1.msra.mxu0 %v41
  %175 = vmatprep.subr.mxu0 0.0
  %176 = vmatpush1.msra.mxu0 %v40
  %177 = vmatprep.subr.mxu0 0.0
  %178 = vmatpush1.msra.mxu0 %v39
  %179 = vmatprep.subr.mxu0 0.0
  %180 = vmatpush1.msra.mxu0 %v38
  %181 = vmatprep.subr.mxu0 0.0
  %182 = vmatpush1.msra.mxu0 %v37
  %183 = vmatprep.subr.mxu0 0.0
  %184 = vmatpush1.msra.mxu0 %v36
  %185 = vmatprep.subr.mxu0 0.0
  %186 = vmatpush1.msra.mxu0 %v35
  %187 = vmatprep.subr.mxu0 0.0
  %188 = vmatpush1.msra.mxu0 %v34
  %189 = vmatprep.subr.mxu0 0.0
  %190 = vmatpush1.msra.mxu0 %v33
  %191 = vmatprep.subr.mxu0 0.0
  %192 = vmatpush1.msra.mxu0 %v32
  %193 = vmatprep.subr.mxu0 0.0
  %194 = vmatpush1.msra.mxu0 %v31
  %195 = vmatprep.subr.mxu0 0.0
  %196 = vmatpush1.msra.mxu0 %v30
  %197 = vmatprep.subr.mxu0 0.0
  %198 = vmatpush1.msra.mxu0 %v29
  %199 = vmatprep.subr.mxu0 0.0
  %200 = vmatpush1.msra.mxu0 %v28
  %201 = vmatprep.subr.mxu0 0.0
  %202 = vmatpush1.msra.mxu0 %v27
  %203 = vmatprep.subr.mxu0 0.0
  %204 = vmatpush1.msra.mxu0 %v26
  %205 = vmatprep.subr.mxu0 0.0
  %206 = vmatpush2.msra.mxu0 %v57
  %207 = vmatprep.subr.mxu0 0.0
  %208 = vmatpush2.msra.mxu0 %v56
  %209 = vmatprep.subr.mxu0 0.0
  %210 = vmatpush2.msra.mxu0 %v55
  %211 = vmatprep.subr.mxu0 0.0
  %212 = vmatpush2.msra.mxu0 %v54
  %213 = vmatprep.subr.mxu0 0.0
  %214 = vmatpush2.msra.mxu0 %v53
  %215 = vmatprep.subr.mxu0 0.0
  %216 = vmatpush2.msra.mxu0 %v52
  %217 = vmatprep.subr.mxu0 0.0
  %218 = vmatpush2.msra.mxu0 %v51
  %219 = vmatprep.subr.mxu0 0.0
  %220 = vmatpush2.msra.mxu0 %v50
  %221 = vmatprep.subr.mxu0 0.0
  %222 = vmatpush2.msra.mxu0 %v49
  %223 = vmatprep.subr.mxu0 0.0
  %224 = vmatpush2.msra.mxu0 %v48
  %225 = vmatprep.subr.mxu0 0.0
  %226 = vmatpush2.msra.mxu0 %v47
  %227 = vmatprep.subr.mxu0 0.0
  %228 = vmatpush2.msra.mxu0 %v46
  %229 = vmatprep.subr.mxu0 0.0
  %230 = vmatpush2.msra.mxu0 %v45
  %231 = vmatprep.subr.mxu0 0.0
  %232 = vmatpush2.msra.mxu0 %v44
  %233 = vmatprep.subr.mxu0 0.0
  %234 = vmatpush2.msra.mxu0 %v43
  %235 = vmatprep.subr.mxu0 0.0
  %236 = vmatpush2.msra.mxu0 %v42
  %237 = vmatprep.mubr.f32.mxu0 %v23
  %238 = vmatmul.mubr.f32.gmra.mxu0 %v22
  %v239 = vpop.f32.mrf.mxu0
  %v240 = vadd.f32 %v170, %v239
  %v241 = vpop.f32.mrf.mxu0
  %242 = vdwg.mxu0
  %243 = vmatprep.subr.mxu0 0.0
  %244 = vmatpush1.msra.mxu0 %v73
  %245 = vmatprep.subr.mxu0 0.0
  %246 = vmatpush1.msra.mxu0 %v72
  %247 = vmatprep.subr.mxu0 0.0
  %248 = vmatpush1.msra.mxu0 %v71
  %249 = vmatprep.subr.mxu0 0.0
  %250 = vmatpush1.msra.mxu0 %v70
  %251 = vmatprep.subr.mxu0 0.0
  %252 = vmatpush1.msra.mxu0 %v69
  %253 = vmatprep.subr.mxu0 0.0
  %254 = vmatpush1.msra.mxu0 %v68
  %255 = vmatprep.subr.mxu0 0.0
  %256 = vmatpush1.msra.mxu0 %v67
  %257 = vmatprep.subr.mxu0 0.0
  %258 = vmatpush1.msra.mxu0 %v66
  %259 = vmatprep.subr.mxu0 0.0
  %260 = vmatpush1.msra.mxu0 %v65
  %261 = vmatprep.subr.mxu0 0.0
  %262 = vmatpush1.msra.mxu0 %v64
  %263 = vmatprep.subr.mxu0 0.0
  %264 = vmatpush1.msra.mxu0 %v63
  %265 = vmatprep.subr.mxu0 0.0
  %266 = vmatpush1.msra.mxu0 %v62
  %267 = vmatprep.subr.mxu0 0.0
  %268 = vmatpush1.msra.mxu0 %v61
  %269 = vmatprep.subr.mxu0 0.0
  %270 = vmatpush1.msra.mxu0 %v60
  %271 = vmatprep.subr.mxu0 0.0
  %272 = vmatpush1.msra.mxu0 %v59
  %273 = vmatprep.subr.mxu0 0.0
  %274 = vmatpush1.msra.mxu0 %v58
  %275 = vmatprep.subr.mxu0 0.0
  %276 = vmatpush2.msra.mxu0 %v89
  %277 = vmatprep.subr.mxu0 0.0
  %278 = vmatpush2.msra.mxu0 %v88
  %279 = vmatprep.subr.mxu0 0.0
  %280 = vmatpush2.msra.mxu0 %v87
  %281 = vmatprep.subr.mxu0 0.0
  %282 = vmatpush2.msra.mxu0 %v86
  %283 = vmatprep.subr.mxu0 0.0
  %284 = vmatpush2.msra.mxu0 %v85
  %285 = vmatprep.subr.mxu0 0.0
  %286 = vmatpush2.msra.mxu0 %v84
  %287 = vmatprep.subr.mxu0 0.0
  %288 = vmatpush2.msra.mxu0 %v83
  %289 = vmatprep.subr.mxu0 0.0
  %290 = vmatpush2.msra.mxu0 %v82
  %291 = vmatprep.subr.mxu0 0.0
  %292 = vmatpush2.msra.mxu0 %v81
  %293 = vmatprep.subr.mxu0 0.0
  %294 = vmatpush2.msra.mxu0 %v80
  %295 = vmatprep.subr.mxu0 0.0
  %296 = vmatpush2.msra.mxu0 %v79
  %297 = vmatprep.subr.mxu0 0.0
  %298 = vmatpush2.msra.mxu0 %v78
  %299 = vmatprep.subr.mxu0 0.0
  %300 = vmatpush2.msra.mxu0 %v77
  %301 = vmatprep.subr.mxu0 0.0
  %302 = vmatpush2.msra.mxu0 %v76
  %303 = vmatprep.subr.mxu0 0.0
  %304 = vmatpush2.msra.mxu0 %v75
  %305 = vmatprep.subr.mxu0 0.0
  %306 = vmatpush2.msra.mxu0 %v74
  %307 = vmatprep.mubr.f32.mxu0 %v25
  %308 = vmatmul.mubr.f32.gmra.mxu0 %v24
  %v309 = vpop.f32.mrf.mxu0
  %v310 = vadd.f32 %v240, %v309
  %v311 = vpop.f32.mrf.mxu0
  %312 = vdwg.mxu0
  %v313 = vld [vmem:[#allocation2] sm:$0x1]
  %v315 = vlaneseq
  %v316 = vshrl.u32 %v315, 7
  %v317 = vsub.s32 0, %v316
  %v318 = vrot.slane %v313, %v317
  %v320 = vadd.f32 %v310, %v318
  %v321 = vsub.f32 0.0, %v320
  %v322 = vmul.f32 %v321, 1.442695
  %v323 = vpow.pop %v322
  %v324 = vadd.f32 %v323, 1.0
  %v325 = vrcp.pop %v324
  %v326 = vmul.f32 1.0, %v325
  %vm327 = vcmask 7168
  %328 = vst.msk [vmem:[%s5] sm:$0xff] %vm327, %v326
  // Predicated region
  $region22: #{vit_tabular_forward.1} parent=0 // pred_check
    _
  $region23: #{vit_tabular_forward.1} parent=0 // pred_check_branch
    %330 = sbr.rel (0) target = $region25
  $region24: #{vit_tabular_forward.1} parent=0 // pred_region
    _
  $region25: #{vit_tabular_forward.1} parent=0 // pred_fallthru
    _
  // Predicated region
  $region26: #{vit_tabular_forward.1} parent=0 // pred_check
    _
  $region27: #{vit_tabular_forward.1} parent=0 // pred_check_branch
    %332 = sbr.rel (0) target = $region29
  $region28: #{vit_tabular_forward.1} parent=0 // pred_region
    _
  $region29: #{vit_tabular_forward.1} parent=0 // pred_fallthru
    _

</llo_original>
